<compile_context>
chip_gen: v6e
topology: v6e:2x2x1
jax: 0.10.0
libtpu: 0.0.40
codegen_flags: <defaults>
</compile_context>

<pallas_src>
import math

import jax
import jax.numpy as jnp
import numpy as np
from jax.experimental import pallas as pl
from jax.experimental.pallas import tpu as pltpu


def _mbs_fused_kernel(x_ref, w1_ref, b1_ref, w2_ref, b2_ref, o_ref):
    # x_ref : (tile_B, feature_dim)   raw row-major features
    # w1_ref: (feature_dim, N*Dt)     block-diagonal fused first-layer weight
    # b1_ref: (1, N*Dt)               first-layer bias, tiled per branch
    # w2_ref: (1, N*Dt)               per-branch / per-head second-layer weight
    # b2_ref: (1, Dt)                 second-layer bias (policy cols | value cols)
    # o_ref : (tile_B, Dt)            fused output (policy | value)
    d_total = o_ref.shape[1]
    n_branches = w1_ref.shape[1] // d_total

    # One MXU matmul, fp32 accumulate: (tile_B, fd) @ (fd, N*Dt).
    h = jnp.dot(x_ref[...], w1_ref[...], preferred_element_type=jnp.float32)

    # Branch reduction with the +b1 / ReLU / *w2 epilogue fused per 128-lane
    # slice: unrolled, lane-aligned, pure-VALU adds; only one slice plus the
    # accumulator of fp32 intermediates is live at a time.
    acc = None
    for n in range(n_branches):
        lo = n * d_total
        hi = lo + d_total
        hn = jnp.maximum(h[:, lo:hi] + b1_ref[:, lo:hi], 0.0) * w2_ref[:, lo:hi]
        acc = hn if acc is None else acc + hn

    o_ref[...] = jnp.maximum(acc + b2_ref[...], 0.0).astype(o_ref.dtype)


def _round_up(x, m):
    return ((x + m - 1) // m) * m


def _pick_tile_b(B, feature_dim, n_dt, d_total):
    """Batch tile size: whole batch for tiny B, else >=2 parallel tiles
    (both v7x TensorCores busy), capped by a VMEM working-set budget."""
    if B <= 64:
        return B  # single block; block dims equal full array dims
    # At least 2 grid steps; 8-sublane aligned; at most 2048 rows per step.
    tile = min(2048, _round_up(pl.cdiv(B, 2), 8))
    # ~12 MiB budget: fits under the smallest default scoped-VMEM limit (v5e
    # 16 MiB) with headroom.  Counts double-buffered x/out tiles + the fp32
    # matmul output h; the (constant-index_map) weights are subtracted once.
    budget = 12 * 1024 * 1024 - 4 * (feature_dim * n_dt + 2 * n_dt + d_total)
    per_row = 4 * (2 * feature_dim + 2 * d_total + n_dt)
    cap = max(8, (budget // per_row) // 8 * 8)
    return min(tile, cap)


def _run_fused(x2d, w1big, b1big, w2big, b2big, d_total):
    B, feature_dim = x2d.shape
    n_dt = w1big.shape[1]
    tile_b = _pick_tile_b(B, feature_dim, n_dt, d_total)

    return pl.pallas_call(
        _mbs_fused_kernel,
        out_shape=jax.ShapeDtypeStruct((B, d_total), jnp.float32),
        grid=(pl.cdiv(B, tile_b),),
        in_specs=[
            pl.BlockSpec((tile_b, feature_dim), lambda i: (i, 0)),
            pl.BlockSpec((feature_dim, n_dt), lambda i: (0, 0)),
            pl.BlockSpec((1, n_dt), lambda i: (0, 0)),
            pl.BlockSpec((1, n_dt), lambda i: (0, 0)),
            pl.BlockSpec((1, d_total), lambda i: (0, 0)),
        ],
        out_specs=pl.BlockSpec((tile_b, d_total), lambda i: (i, 0)),
        compiler_params=pltpu.CompilerParams(
            dimension_semantics=("parallel",)),
    )(x2d, w1big, b1big, w2big, b2big)


def _init_linear(key, fan_in, fan_out):
    """PyTorch nn.Linear default init: U(-1/sqrt(fan_in), 1/sqrt(fan_in))."""
    bound = 1.0 / math.sqrt(fan_in)
    kw, kb = jax.random.split(key)
    # stored transposed relative to torch: (fan_in, fan_out)
    w = jax.random.uniform(kw, (fan_in, fan_out), jnp.float32, -bound, bound)
    b = jax.random.uniform(kb, (1, fan_out), jnp.float32, -bound, bound)
    return w, b


class MultiBranchSelectorPallas:
    def __init__(self, feature_dim, n_branches, groups,
                 last_layer_dim_pi=64, last_layer_dim_vf=64, *, key):
        self.groups = groups
        self.n_branches = n_branches
        self.feat_pb = feature_dim // n_branches
        self.feature_dim = self.feat_pb * n_branches
        self.latent_dim_pi = last_layer_dim_pi
        self.latent_dim_vf = last_layer_dim_vf
        self.d_total = last_layer_dim_pi + last_layer_dim_vf

        kp1, kp2, kv1, kv2 = jax.random.split(key, 4)
        # raw per-head params (kept for reference checking / export)
        self.pw1, self.pb1 = _init_linear(kp1, self.feat_pb, last_layer_dim_pi)
        self.pw2, self.pb2 = _init_linear(kp2, n_branches, 1)       # (N,1), (1,1)
        self.vw1, self.vb1 = _init_linear(kv1, self.feat_pb, last_layer_dim_vf)
        self.vw2, self.vb2 = _init_linear(kv2, n_branches, 1)

        # --- fused, lane-dense parameters for the kernel ---
        N, F, Dt = n_branches, self.feat_pb, self.d_total
        w1c = jnp.concatenate([self.pw1, self.vw1], axis=1)         # (F, Dt)
        b1c = jnp.concatenate([self.pb1, self.vb1], axis=1)         # (1, Dt)
        w1big = jnp.zeros((N * F, N * Dt), jnp.float32)
        for n in range(N):
            w1big = w1big.at[n * F:(n + 1) * F, n * Dt:(n + 1) * Dt].set(w1c)
        self.w1big = w1big                                           # (feature_dim, N*Dt)
        self.b1big = jnp.tile(b1c, (1, N))                           # (1, N*Dt)
        w2c = jnp.concatenate(
            [jnp.broadcast_to(self.pw2, (N, last_layer_dim_pi)),
             jnp.broadcast_to(self.vw2, (N, last_layer_dim_vf))], axis=1)  # (N, Dt)
        self.w2big = w2c.reshape(1, N * Dt)                          # (1, N*Dt)
        self.b2big = jnp.concatenate(
            [jnp.broadcast_to(self.pb2, (1, last_layer_dim_pi)),
             jnp.broadcast_to(self.vb2, (1, last_layer_dim_vf))], axis=1)  # (1, Dt)

    def _fused(self, features):
        return _run_fused(features, self.w1big, self.b1big,
                          self.w2big, self.b2big, self.d_total)

    def forward(self, features):
        y = self._fused(features)
        return y[:, :self.latent_dim_pi], y[:, self.latent_dim_pi:]

    def forward_actor(self, features):
        return self._fused(features)[:, :self.latent_dim_pi]

    def forward_critic(self, features):
        return self._fused(features)[:, self.latent_dim_pi:]


def _ref_head(x_bnf, w1, b1, w2, b2):
    """Pure-JAX reference matching the PyTorch sequential exactly."""
    hp = jax.lax.Precision.HIGHEST
    h = jnp.maximum(jnp.einsum("bnf,fd->bnd", x_bnf, w1, precision=hp) + b1, 0.0)
    h = jnp.swapaxes(h, -1, -2)                                      # (B, D, N)
    y = jnp.maximum(jnp.einsum("bdn,no->bdo", h, w2, precision=hp)
                    + b2.reshape(1, 1, 1), 0.0)
    return y.reshape(y.shape[0], -1)


if __name__ == "__main__":
    B = 2
    n_branches = 4
    feat_pb = 8
    feature_dim = n_branches * feat_pb          # 32
    last_pi = 64
    last_vf = 64

    key = jax.random.PRNGKey(0)
    k_feat, k_feat2, k_params = jax.random.split(key, 3)

    features = jax.random.normal(k_feat, (B, feature_dim), jnp.float32)

    model = MultiBranchSelectorPallas(
        feature_dim, n_branches, groups=[["g"]] * n_branches,
        last_layer_dim_pi=last_pi, last_layer_dim_vf=last_vf, key=k_params)

    pi_out, vf_out = model.forward(features)
    jax.block_until_ready((pi_out, vf_out))

    # verify against pure-JAX reference of the torch sequential
    x_bnf = features.reshape(B, n_branches, feat_pb)
    pi_ref = _ref_head(x_bnf, model.pw1, model.pb1, model.pw2, model.pb2)
    vf_ref = _ref_head(x_bnf, model.vw1, model.vb1, model.vw2, model.vb2)
    np.testing.assert_allclose(np.asarray(pi_out), np.asarray(pi_ref),
                               rtol=2e-5, atol=1e-5)
    np.testing.assert_allclose(np.asarray(vf_out), np.asarray(vf_ref),
                               rtol=2e-5, atol=1e-5)
    assert pi_out.shape == (B, last_pi) and vf_out.shape == (B, last_vf)

    # also exercise the multi-step (2 parallel tiles) + partial-last-block path
    B2 = 600
    features2 = jax.random.normal(k_feat2, (B2, feature_dim), jnp.float32)
    pi2, vf2 = model.forward(features2)
    jax.block_until_ready((pi2, vf2))
    x2_bnf = features2.reshape(B2, n_branches, feat_pb)
    np.testing.assert_allclose(
        np.asarray(pi2),
        np.asarray(_ref_head(x2_bnf, model.pw1, model.pb1, model.pw2, model.pb2)),
        rtol=2e-5, atol=1e-5)
    np.testing.assert_allclose(
        np.asarray(vf2),
        np.asarray(_ref_head(x2_bnf, model.vw1, model.vb1, model.vw2, model.vb2)),
        rtol=2e-5, atol=1e-5)

    print("KERNEL_OK")
</pallas_src>

<mosaic_0001>
module attributes {stable_mosaic.version = 11 : i64} {
  func.func @_mbs_fused_kernel(%arg0: i32, %arg1: memref<2x32xf32, #tpu.memory_space<vmem>>, %arg2: memref<32x512xf32, #tpu.memory_space<vmem>>, %arg3: memref<1x512xf32, #tpu.memory_space<vmem>>, %arg4: memref<1x512xf32, #tpu.memory_space<vmem>>, %arg5: memref<1x128xf32, #tpu.memory_space<vmem>>, %arg6: memref<2x128xf32, #tpu.memory_space<vmem>>) attributes {dimension_semantics = [#tpu.dimension_semantics<parallel>], iteration_bounds = array<i64: 1>, scalar_prefetch = 0 : i64, scratch_operands = 0 : i64, tpu.core_type = #tpu.core_type<tc>, window_params = [{transform_indices = @transform_0, window_bounds = array<i64: 2, 32>}, {pipeline_mode = #tpu.pipeline_mode<synchronous>, transform_indices = @transform_1, window_bounds = array<i64: 32, 512>}, {pipeline_mode = #tpu.pipeline_mode<synchronous>, transform_indices = @transform_2, window_bounds = array<i64: 1, 512>}, {pipeline_mode = #tpu.pipeline_mode<synchronous>, transform_indices = @transform_3, window_bounds = array<i64: 1, 512>}, {pipeline_mode = #tpu.pipeline_mode<synchronous>, transform_indices = @transform_4, window_bounds = array<i64: 1, 128>}, {transform_indices = @transform_5, window_bounds = array<i64: 2, 128>}]} {
    %c0 = arith.constant 0 : index
    %c0_0 = arith.constant 0 : index
    %0 = vector.load %arg1[%c0, %c0_0] : memref<2x32xf32, #tpu.memory_space<vmem>>, vector<2x32xf32>
    %c0_1 = arith.constant 0 : index
    %c0_2 = arith.constant 0 : index
    %1 = vector.load %arg2[%c0_1, %c0_2] : memref<32x512xf32, #tpu.memory_space<vmem>>, vector<32x512xf32>
    %cst = arith.constant dense<0.000000e+00> : vector<2x512xf32>
    %2 = tpu.matmul %0, %1, %cst {dimension_numbers = #tpu.dot_dimension_numbers<[1], [0], [0], [1], [0, 0, 1, 1], [], []>} : vector<2x32xf32>, vector<32x512xf32>, vector<2x512xf32> -> vector<2x512xf32>
    %3 = vector.extract_strided_slice %2 {offsets = [0, 0], sizes = [2, 128], strides = [1, 1]} : vector<2x512xf32> to vector<2x128xf32>
    %c0_3 = arith.constant 0 : index
    %c0_4 = arith.constant 0 : index
    %4 = vector.load %arg3[%c0_3, %c0_4] : memref<1x512xf32, #tpu.memory_space<vmem>>, vector<1x128xf32>
    %5 = vector.broadcast %4 : vector<1x128xf32> to vector<2x128xf32>
    %6 = arith.addf %3, %5 : vector<2x128xf32>
    %cst_5 = arith.constant 0.000000e+00 : f32
    %7 = vector.broadcast %cst_5 : f32 to vector<2x128xf32>
    %8 = arith.maximumf %6, %7 : vector<2x128xf32>
    %c0_6 = arith.constant 0 : index
    %c0_7 = arith.constant 0 : index
    %9 = vector.load %arg4[%c0_6, %c0_7] : memref<1x512xf32, #tpu.memory_space<vmem>>, vector<1x128xf32>
    %10 = vector.broadcast %9 : vector<1x128xf32> to vector<2x128xf32>
    %11 = arith.mulf %8, %10 : vector<2x128xf32>
    %12 = vector.extract_strided_slice %2 {offsets = [0, 128], sizes = [2, 128], strides = [1, 1]} : vector<2x512xf32> to vector<2x128xf32>
    %c0_8 = arith.constant 0 : index
    %c128 = arith.constant 128 : index
    %13 = vector.load %arg3[%c0_8, %c128] : memref<1x512xf32, #tpu.memory_space<vmem>>, vector<1x128xf32>
    %14 = vector.broadcast %13 : vector<1x128xf32> to vector<2x128xf32>
    %15 = arith.addf %12, %14 : vector<2x128xf32>
    %cst_9 = arith.constant 0.000000e+00 : f32
    %16 = vector.broadcast %cst_9 : f32 to vector<2x128xf32>
    %17 = arith.maximumf %15, %16 : vector<2x128xf32>
    %c0_10 = arith.constant 0 : index
    %c128_11 = arith.constant 128 : index
    %18 = vector.load %arg4[%c0_10, %c128_11] : memref<1x512xf32, #tpu.memory_space<vmem>>, vector<1x128xf32>
    %19 = vector.broadcast %18 : vector<1x128xf32> to vector<2x128xf32>
    %20 = arith.mulf %17, %19 : vector<2x128xf32>
    %21 = arith.addf %11, %20 : vector<2x128xf32>
    %22 = vector.extract_strided_slice %2 {offsets = [0, 256], sizes = [2, 128], strides = [1, 1]} : vector<2x512xf32> to vector<2x128xf32>
    %c0_12 = arith.constant 0 : index
    %c256 = arith.constant 256 : index
    %23 = vector.load %arg3[%c0_12, %c256] : memref<1x512xf32, #tpu.memory_space<vmem>>, vector<1x128xf32>
    %24 = vector.broadcast %23 : vector<1x128xf32> to vector<2x128xf32>
    %25 = arith.addf %22, %24 : vector<2x128xf32>
    %cst_13 = arith.constant 0.000000e+00 : f32
    %26 = vector.broadcast %cst_13 : f32 to vector<2x128xf32>
    %27 = arith.maximumf %25, %26 : vector<2x128xf32>
    %c0_14 = arith.constant 0 : index
    %c256_15 = arith.constant 256 : index
    %28 = vector.load %arg4[%c0_14, %c256_15] : memref<1x512xf32, #tpu.memory_space<vmem>>, vector<1x128xf32>
    %29 = vector.broadcast %28 : vector<1x128xf32> to vector<2x128xf32>
    %30 = arith.mulf %27, %29 : vector<2x128xf32>
    %31 = arith.addf %21, %30 : vector<2x128xf32>
    %32 = vector.extract_strided_slice %2 {offsets = [0, 384], sizes = [2, 128], strides = [1, 1]} : vector<2x512xf32> to vector<2x128xf32>
    %c0_16 = arith.constant 0 : index
    %c384 = arith.constant 384 : index
    %33 = vector.load %arg3[%c0_16, %c384] : memref<1x512xf32, #tpu.memory_space<vmem>>, vector<1x128xf32>
    %34 = vector.broadcast %33 : vector<1x128xf32> to vector<2x128xf32>
    %35 = arith.addf %32, %34 : vector<2x128xf32>
    %cst_17 = arith.constant 0.000000e+00 : f32
    %36 = vector.broadcast %cst_17 : f32 to vector<2x128xf32>
    %37 = arith.maximumf %35, %36 : vector<2x128xf32>
    %c0_18 = arith.constant 0 : index
    %c384_19 = arith.constant 384 : index
    %38 = vector.load %arg4[%c0_18, %c384_19] : memref<1x512xf32, #tpu.memory_space<vmem>>, vector<1x128xf32>
    %39 = vector.broadcast %38 : vector<1x128xf32> to vector<2x128xf32>
    %40 = arith.mulf %37, %39 : vector<2x128xf32>
    %41 = arith.addf %31, %40 : vector<2x128xf32>
    %c0_20 = arith.constant 0 : index
    %c0_21 = arith.constant 0 : index
    %42 = vector.load %arg5[%c0_20, %c0_21] : memref<1x128xf32, #tpu.memory_space<vmem>>, vector<1x128xf32>
    %43 = vector.broadcast %42 : vector<1x128xf32> to vector<2x128xf32>
    %44 = arith.addf %41, %43 : vector<2x128xf32>
    %cst_22 = arith.constant 0.000000e+00 : f32
    %45 = vector.broadcast %cst_22 : f32 to vector<2x128xf32>
    %46 = arith.maximumf %44, %45 : vector<2x128xf32>
    %c0_23 = arith.constant 0 : index
    %c0_24 = arith.constant 0 : index
    %47 = vector.load %arg6[%c0_23, %c0_24] : memref<2x128xf32, #tpu.memory_space<vmem>>, vector<2x128xf32>
    tpu.vector_store %arg6[%c0_23, %c0_24], %46 {strides = array<i32>} : memref<2x128xf32, #tpu.memory_space<vmem>>, vector<2x128xf32>,
    return
  }
  func.func @transform_0(%arg0: i32) -> (i32, i32) {
    %c0_i32 = arith.constant 0 : i32
    %c0_i32_0 = arith.constant 0 : i32
    return %arg0, %c0_i32 : i32, i32
  }
  func.func @transform_1(%arg0: i32) -> (i32, i32) {
    %c0_i32 = arith.constant 0 : i32
    %c0_i32_0 = arith.constant 0 : i32
    %c0_i32_1 = arith.constant 0 : i32
    return %c0_i32, %c0_i32_0 : i32, i32
  }
  func.func @transform_2(%arg0: i32) -> (i32, i32) {
    %c0_i32 = arith.constant 0 : i32
    %c0_i32_0 = arith.constant 0 : i32
    %c0_i32_1 = arith.constant 0 : i32
    return %c0_i32, %c0_i32_0 : i32, i32
  }
  func.func @transform_3(%arg0: i32) -> (i32, i32) {
    %c0_i32 = arith.constant 0 : i32
    %c0_i32_0 = arith.constant 0 : i32
    %c0_i32_1 = arith.constant 0 : i32
    return %c0_i32, %c0_i32_0 : i32, i32
  }
  func.func @transform_4(%arg0: i32) -> (i32, i32) {
    %c0_i32 = arith.constant 0 : i32
    %c0_i32_0 = arith.constant 0 : i32
    %c0_i32_1 = arith.constant 0 : i32
    return %c0_i32, %c0_i32_0 : i32, i32
  }
  func.func @transform_5(%arg0: i32) -> (i32, i32) {
    %c0_i32 = arith.constant 0 : i32
    %c0_i32_0 = arith.constant 0 : i32
    return %arg0, %c0_i32 : i32, i32
  }
}

</mosaic_0001>

<llo_original>
// kernel: tpu_custom_call.1
$region0: #{tpu_custom_call.1}
  #allocation0 [shape = 'u32[]', space=smem, size = 0x4, offset = 0x4, fixed_abs, tag = 'smem constant byte address 0x4 - core index']
  #allocation1 [shape = 'u32[144,128]{1,0:T(1,128)}', space=vmem, size = 0x12000, scoped, tag = 'internal scratch']
  %s0 = inlined_call_operand.hbm [shape: f32[2,32], index: 0, kind: input, shape index: {}]
  %s1 = inlined_call_operand.hbm [shape: f32[32,512], index: 1, kind: input, shape index: {}]
  %s2 = inlined_call_operand.hbm [shape: f32[1,512], index: 2, kind: input, shape index: {}]
  %s3 = inlined_call_operand.vmem [shape: f32[1,512], index: 3, kind: input, shape index: {}]
  %s4 = inlined_call_operand.vmem [shape: f32[1,128], index: 4, kind: input, shape index: {}]
  %s5 = inlined_call_operand.hbm [shape: f32[2,128], index: 5, kind: output, shape index: {}]
  %s6 = sld [smem:[#allocation0]]
  $region42: #{tpu_custom_call.1} parent=0
    _
  %s8 = ssub.s32 1, %s6
  %s9 = scalar_select 0, %s8, %s6
  $region1: #{tpu_custom_call.1} parent=0
    #allocation2 [shape = 'u8[1024]{0}', space=vmem, size = 0x400, scoped, tag = 'input window, operand 0, single buffered']
    #allocation3 [shape = 's32[1]{0}', space=sflag, size = 0x4, scoped, tag = 'scoped memory for tpu_custom_call.1']
    #allocation4 [shape = 's32[1]{0}', space=sflag, size = 0x4, scoped, tag = 'scoped memory for tpu_custom_call.1']
    #allocation5 [shape = 'u8[65536]{0}', space=vmem, size = 0x10000, scoped, tag = 'input window, operand 1, single buffered']
    #allocation6 [shape = 's32[1]{0}', space=sflag, size = 0x4, scoped, tag = 'scoped memory for tpu_custom_call.1']
    #allocation7 [shape = 'u8[2048]{0}', space=vmem, size = 0x800, scoped, tag = 'input window, operand 2, single buffered']
    #allocation8 [shape = 'u8[1024]{0}', space=vmem, size = 0x400, scoped, tag = 'output window, operand 0, single buffered']
    %10 = vsyncpa [#allocation3], 0
    %11 = vsyncpa [#allocation6], 0
    %12 = vsyncpa [#allocation4], 0
    // Predicated region
    $region2: #{tpu_custom_call.1} parent=1 // pred_check
      _
    $region3: #{tpu_custom_call.1} parent=1 // pred_check_branch
      %14 = sbr.rel (0) target = $region5
    $region4: #{tpu_custom_call.1} parent=1 // pred_region
      %s16 = ssub.s32 32, 32
      %17 = vsyncadd [#allocation3], %s16
      %s19 = sshll.u32 [#allocation2], 4
      %s20 = int_to_ptr.vmem [resolvable:$true] %s19
      %22 = dma.hbm_to_vmem [thread:$0]  %s0, 32, %s20, [#allocation3]
    $region5: #{tpu_custom_call.1} parent=1 // pred_fallthru
      _
    // Predicated region
    $region6: #{tpu_custom_call.1} parent=1 // pred_check
      _
    $region7: #{tpu_custom_call.1} parent=1 // pred_check_branch
      %24 = sbr.rel (0) target = $region9
    $region8: #{tpu_custom_call.1} parent=1 // pred_region
      %s26 = ssub.s32 2048, 2048
      %27 = vsyncadd [#allocation6], %s26
      %s28 = sshll.u32 [#allocation5], 4
      %s29 = int_to_ptr.vmem [resolvable:$true] %s28
      %34 = dma.hbm_to_vmem [thread:$0]  %s1, 2048, %s29, [#allocation6], 512, 512, 32
    $region9: #{tpu_custom_call.1} parent=1 // pred_fallthru
      _
    // Predicated region
    $region10: #{tpu_custom_call.1} parent=1 // pred_check
      _
    $region11: #{tpu_custom_call.1} parent=1 // pred_check_branch
      %36 = sbr.rel (0) target = $region13
    $region12: #{tpu_custom_call.1} parent=1 // pred_region
      %s38 = ssub.s32 64, 64
      %39 = vsyncadd [#allocation6], %s38
      %s41 = sshll.u32 [#allocation7], 4
      %s42 = int_to_ptr.vmem [resolvable:$true] %s41
      %44 = dma.hbm_to_vmem [thread:$0]  %s2, 64, %s42, [#allocation6]
    $region13: #{tpu_custom_call.1} parent=1 // pred_fallthru
      _
    // Predicated region
    $region14: #{tpu_custom_call.1} parent=1 // pred_check
      _
    $region15: #{tpu_custom_call.1} parent=1 // pred_check_branch
      %46 = sbr.rel (0) target = $region17
    $region16: #{tpu_custom_call.1} parent=1 // pred_region
      _
    $region17: #{tpu_custom_call.1} parent=1 // pred_fallthru
      _
    // Predicated region
    $region18: #{tpu_custom_call.1} parent=1 // pred_check
      _
    $region19: #{tpu_custom_call.1} parent=1 // pred_check_branch
      %48 = sbr.rel (0) target = $region21
    $region20: #{tpu_custom_call.1} parent=1 // pred_region
      _
    $region21: #{tpu_custom_call.1} parent=1 // pred_fallthru
      _
    // Predicated region
    $region22: #{tpu_custom_call.1} parent=1 // pred_check
      _
    $region23: #{tpu_custom_call.1} parent=1 // pred_check_branch
      %50 = sbr.rel (0) target = $region25
    $region24: #{tpu_custom_call.1} parent=1 // pred_region
      %51 = dma.done [#allocation3], 32
    $region25: #{tpu_custom_call.1} parent=1 // pred_fallthru
      _
    // Predicated region
    $region26: #{tpu_custom_call.1} parent=1 // pred_check
      _
    $region27: #{tpu_custom_call.1} parent=1 // pred_check_branch
      %53 = sbr.rel (0) target = $region29
    $region28: #{tpu_custom_call.1} parent=1 // pred_region
      %54 = dma.done [#allocation6], 2048
    $region29: #{tpu_custom_call.1} parent=1 // pred_fallthru
      _
    // Predicated region
    $region30: #{tpu_custom_call.1} parent=1 // pred_check
      _
    $region31: #{tpu_custom_call.1} parent=1 // pred_check_branch
      %56 = sbr.rel (0) target = $region33
    $region32: #{tpu_custom_call.1} parent=1 // pred_region
      %57 = dma.done [#allocation6], 64
    $region33: #{tpu_custom_call.1} parent=1 // pred_fallthru
      _
    %v58 = vld [vmem:[#allocation2] sm:$0x3]
    %v59 = vld [vmem:[#allocation5] sm:$0xff]
    %v60 = vld [vmem:[#allocation5 + $0x8] sm:$0xff]
    %v61 = vld [vmem:[#allocation5 + $0x10] sm:$0xff]
    %v62 = vld [vmem:[#allocation5 + $0x18] sm:$0xff]
    %v63 = vld [vmem:[#allocation5 + $0x20] sm:$0xff]
    %v64 = vld [vmem:[#allocation5 + $0x28] sm:$0xff]
    %v65 = vld [vmem:[#allocation5 + $0x30] sm:$0xff]
    %v66 = vld [vmem:[#allocation5 + $0x38] sm:$0xff]
    %v67 = vld [vmem:[#allocation5 + $0x40] sm:$0xff]
    %v68 = vld [vmem:[#allocation5 + $0x48] sm:$0xff]
    %v69 = vld [vmem:[#allocation5 + $0x50] sm:$0xff]
    %v70 = vld [vmem:[#allocation5 + $0x58] sm:$0xff]
    %v71 = vld [vmem:[#allocation5 + $0x60] sm:$0xff]
    %v72 = vld [vmem:[#allocation5 + $0x68] sm:$0xff]
    %v73 = vld [vmem:[#allocation5 + $0x70] sm:$0xff]
    %v74 = vld [vmem:[#allocation5 + $0x78] sm:$0xff]
    %vm75 = vcmask 261120
    %v77 = vsel %vm75, %v58, 0
    %79 = vmatprep.subr.mxu0 0.0
    %80 = vmatpush1.msra.mxu0 0.0
    %81 = vmatprep.subr.mxu0 0.0
    %82 = vmatpush1.msra.mxu0 0.0
    %83 = vmatprep.subr.mxu0 0.0
    %84 = vmatpush1.msra.mxu0 0.0
    %85 = vmatprep.subr.mxu0 0.0
    %86 = vmatpush1.msra.mxu0 0.0
    %87 = vmatprep.subr.mxu0 0.0
    %88 = vmatpush1.msra.mxu0 0.0
    %89 = vmatprep.subr.mxu0 0.0
    %90 = vmatpush1.msra.mxu0 0.0
    %91 = vmatprep.subr.mxu0 0.0
    %92 = vmatpush1.msra.mxu0 0.0
    %93 = vmatprep.subr.mxu0 0.0
    %94 = vmatpush1.msra.mxu0 0.0
    %95 = vmatprep.subr.mxu0 0.0
    %96 = vmatpush1.msra.mxu0 0.0
    %97 = vmatprep.subr.mxu0 0.0
    %98 = vmatpush1.msra.mxu0 0.0
    %99 = vmatprep.subr.mxu0 0.0
    %100 = vmatpush1.msra.mxu0 0.0
    %101 = vmatprep.subr.mxu0 0.0
    %102 = vmatpush1.msra.mxu0 0.0
    %103 = vmatprep.subr.mxu0 %v72
    %104 = vmatpush1.msra.mxu0 %v71
    %105 = vmatprep.subr.mxu0 %v68
    %106 = vmatpush1.msra.mxu0 %v67
    %107 = vmatprep.subr.mxu0 %v64
    %108 = vmatpush1.msra.mxu0 %v63
    %109 = vmatprep.subr.mxu0 %v60
    %110 = vmatpush1.msra.mxu0 %v59
    %111 = vmatprep.subr.mxu0 0.0
    %112 = vmatpush2.msra.mxu0 0.0
    %113 = vmatprep.subr.mxu0 0.0
    %114 = vmatpush2.msra.mxu0 0.0
    %115 = vmatprep.subr.mxu0 0.0
    %116 = vmatpush2.msra.mxu0 0.0
    %117 = vmatprep.subr.mxu0 0.0
    %118 = vmatpush2.msra.mxu0 0.0
    %119 = vmatprep.subr.mxu0 0.0
    %120 = vmatpush2.msra.mxu0 0.0
    %121 = vmatprep.subr.mxu0 0.0
    %122 = vmatpush2.msra.mxu0 0.0
    %123 = vmatprep.subr.mxu0 0.0
    %124 = vmatpush2.msra.mxu0 0.0
    %125 = vmatprep.subr.mxu0 0.0
    %126 = vmatpush2.msra.mxu0 0.0
    %127 = vmatprep.subr.mxu0 0.0
    %128 = vmatpush2.msra.mxu0 0.0
    %129 = vmatprep.subr.mxu0 0.0
    %130 = vmatpush2.msra.mxu0 0.0
    %131 = vmatprep.subr.mxu0 0.0
    %132 = vmatpush2.msra.mxu0 0.0
    %133 = vmatprep.subr.mxu0 0.0
    %134 = vmatpush2.msra.mxu0 0.0
    %135 = vmatprep.subr.mxu0 0.0
    %136 = vmatpush2.msra.mxu0 0.0
    %137 = vmatprep.subr.mxu0 0.0
    %138 = vmatpush2.msra.mxu0 0.0
    %139 = vmatprep.subr.mxu0 0.0
    %140 = vmatpush2.msra.mxu0 0.0
    %141 = vmatprep.subr.mxu0 0.0
    %142 = vmatpush2.msra.mxu0 0.0
    %143 = vmatprep.mubr.f32.mxu0 0.0
    %144 = vmatmul.mubr.f32.gmra.mxu0 %v77
    %v145 = vpop.f32.mrf.mxu0
    %v146 = vadd.f32 0.0, %v145
    %v147 = vpop.f32.mrf.mxu0
    %v148 = vadd.f32 0.0, %v147
    %149 = vdwg.mxu0
    %150 = vmatprep.subr.mxu0 0.0
    %151 = vmatpush1.msra.mxu0 0.0
    %152 = vmatprep.subr.mxu0 0.0
    %153 = vmatpush1.msra.mxu0 0.0
    %154 = vmatprep.subr.mxu0 0.0
    %155 = vmatpush1.msra.mxu0 0.0
    %156 = vmatprep.subr.mxu0 0.0
    %157 = vmatpush1.msra.mxu0 0.0
    %158 = vmatprep.subr.mxu0 0.0
    %159 = vmatpush1.msra.mxu0 0.0
    %160 = vmatprep.subr.mxu0 0.0
    %161 = vmatpush1.msra.mxu0 0.0
    %162 = vmatprep.subr.mxu0 0.0
    %163 = vmatpush1.msra.mxu0 0.0
    %164 = vmatprep.subr.mxu0 0.0
    %165 = vmatpush1.msra.mxu0 0.0
    %166 = vmatprep.subr.mxu0 0.0
    %167 = vmatpush1.msra.mxu0 0.0
    %168 = vmatprep.subr.mxu0 0.0
    %169 = vmatpush1.msra.mxu0 0.0
    %170 = vmatprep.subr.mxu0 0.0
    %171 = vmatpush1.msra.mxu0 0.0
    %172 = vmatprep.subr.mxu0 0.0
    %173 = vmatpush1.msra.mxu0 0.0
    %174 = vmatprep.subr.mxu0 %v74
    %175 = vmatpush1.msra.mxu0 %v73
    %176 = vmatprep.subr.mxu0 %v70
    %177 = vmatpush1.msra.mxu0 %v69
    %178 = vmatprep.subr.mxu0 %v66
    %179 = vmatpush1.msra.mxu0 %v65
    %180 = vmatprep.subr.mxu0 %v62
    %181 = vmatpush1.msra.mxu0 %v61
    %182 = vmatprep.subr.mxu0 0.0
    %183 = vmatpush2.msra.mxu0 0.0
    %184 = vmatprep.subr.mxu0 0.0
    %185 = vmatpush2.msra.mxu0 0.0
    %186 = vmatprep.subr.mxu0 0.0
    %187 = vmatpush2.msra.mxu0 0.0
    %188 = vmatprep.subr.mxu0 0.0
    %189 = vmatpush2.msra.mxu0 0.0
    %190 = vmatprep.subr.mxu0 0.0
    %191 = vmatpush2.msra.mxu0 0.0
    %192 = vmatprep.subr.mxu0 0.0
    %193 = vmatpush2.msra.mxu0 0.0
    %194 = vmatprep.subr.mxu0 0.0
    %195 = vmatpush2.msra.mxu0 0.0
    %196 = vmatprep.subr.mxu0 0.0
    %197 = vmatpush2.msra.mxu0 0.0
    %198 = vmatprep.subr.mxu0 0.0
    %199 = vmatpush2.msra.mxu0 0.0
    %200 = vmatprep.subr.mxu0 0.0
    %201 = vmatpush2.msra.mxu0 0.0
    %202 = vmatprep.subr.mxu0 0.0
    %203 = vmatpush2.msra.mxu0 0.0
    %204 = vmatprep.subr.mxu0 0.0
    %205 = vmatpush2.msra.mxu0 0.0
    %206 = vmatprep.subr.mxu0 0.0
    %207 = vmatpush2.msra.mxu0 0.0
    %208 = vmatprep.subr.mxu0 0.0
    %209 = vmatpush2.msra.mxu0 0.0
    %210 = vmatprep.subr.mxu0 0.0
    %211 = vmatpush2.msra.mxu0 0.0
    %212 = vmatprep.subr.mxu0 0.0
    %213 = vmatpush2.msra.mxu0 0.0
    %214 = vmatprep.mubr.f32.mxu0 0.0
    %215 = vmatmul.mubr.f32.gmra.mxu0 %v77
    %v216 = vpop.f32.mrf.mxu0
    %v217 = vadd.f32 0.0, %v216
    %v218 = vpop.f32.mrf.mxu0
    %v219 = vadd.f32 0.0, %v218
    %220 = vdwg.mxu0
    %v221 = vld [vmem:[#allocation7] sm:$0x1]
    %v223 = vlaneseq
    %v224 = vshrl.u32 %v223, 7
    %v225 = vsub.s32 0, %v224
    %v226 = vrot.slane %v221, %v225
    %v228 = vadd.f32 %v146, %v226
    %v229 = vmax.f32 %v228, 0.0
    %v230 = vld [vmem:[%s3] sm:$0x1]
    %v232 = vlaneseq
    %v233 = vshrl.u32 %v232, 7
    %v234 = vsub.s32 0, %v233
    %v235 = vrot.slane %v230, %v234
    %v237 = vmul.f32 %v229, %v235
    %v238 = vld [vmem:[#allocation7 + $0x1] sm:$0x1]
    %v240 = vlaneseq
    %v241 = vshrl.u32 %v240, 7
    %v242 = vsub.s32 0, %v241
    %v243 = vrot.slane %v238, %v242
    %v245 = vadd.f32 %v148, %v243
    %v246 = vmax.f32 %v245, 0.0
    %v247 = vld [vmem:[%s3 + $0x1] sm:$0x1]
    %v249 = vlaneseq
    %v250 = vshrl.u32 %v249, 7
    %v251 = vsub.s32 0, %v250
    %v252 = vrot.slane %v247, %v251
    %v254 = vmul.f32 %v246, %v252
    %v255 = vadd.f32 %v237, %v254
    %v256 = vld [vmem:[#allocation7 + $0x2] sm:$0x1]
    %v258 = vlaneseq
    %v259 = vshrl.u32 %v258, 7
    %v260 = vsub.s32 0, %v259
    %v261 = vrot.slane %v256, %v260
    %v263 = vadd.f32 %v217, %v261
    %v264 = vmax.f32 %v263, 0.0
    %v265 = vld [vmem:[%s3 + $0x2] sm:$0x1]
    %v267 = vlaneseq
    %v268 = vshrl.u32 %v267, 7
    %v269 = vsub.s32 0, %v268
    %v270 = vrot.slane %v265, %v269
    %v272 = vmul.f32 %v264, %v270
    %v273 = vadd.f32 %v255, %v272
    %v274 = vld [vmem:[#allocation7 + $0x3] sm:$0x1]
    %v276 = vlaneseq
    %v277 = vshrl.u32 %v276, 7
    %v278 = vsub.s32 0, %v277
    %v279 = vrot.slane %v274, %v278
    %v281 = vadd.f32 %v219, %v279
    %v282 = vmax.f32 %v281, 0.0
    %v283 = vld [vmem:[%s3 + $0x3] sm:$0x1]
    %v285 = vlaneseq
    %v286 = vshrl.u32 %v285, 7
    %v287 = vsub.s32 0, %v286
    %v288 = vrot.slane %v283, %v287
    %v290 = vmul.f32 %v282, %v288
    %v291 = vadd.f32 %v273, %v290
    %v292 = vld [vmem:[%s4] sm:$0x1]
    %v294 = vlaneseq
    %v295 = vshrl.u32 %v294, 7
    %v296 = vsub.s32 0, %v295
    %v297 = vrot.slane %v292, %v296
    %v299 = vadd.f32 %v291, %v297
    %v300 = vmax.f32 %v299, 0.0
    %301 = vst [vmem:[#allocation8] sm:$0x3] %v300
    // Predicated region
    $region34: #{tpu_custom_call.1} parent=1 // pred_check
      _
    $region35: #{tpu_custom_call.1} parent=1 // pred_check_branch
      %303 = sbr.rel (0) target = $region37
    $region36: #{tpu_custom_call.1} parent=1 // pred_region
      %s305 = ssub.s32 32, 32
      %306 = vsyncadd [#allocation4], %s305
      %s308 = sshll.u32 [#allocation8], 4
      %s309 = int_to_ptr.vmem [resolvable:$true] %s308
      %311 = dma.vmem_to_hbm [thread:$0]  %s309, 32, %s5, [#allocation4]
    $region37: #{tpu_custom_call.1} parent=1 // pred_fallthru
      _
    // Predicated region
    $region38: #{tpu_custom_call.1} parent=1 // pred_check
      _
    $region39: #{tpu_custom_call.1} parent=1 // pred_check_branch
      %313 = sbr.rel (0) target = $region41
    $region40: #{tpu_custom_call.1} parent=1 // pred_region
      %314 = dma.done [#allocation4], 32
    $region41: #{tpu_custom_call.1} parent=1 // pred_fallthru
      _
    %315 = vsyncpa [#allocation3], 1
    %316 = vsyncpa [#allocation6], 1
    %317 = vsyncpa [#allocation4], 1

</llo_original>
